<compile_context>
chip_gen: v5e
topology: v5e:2x2
jax: 0.10.0
libtpu: 0.0.40
codegen_flags: <defaults>
</compile_context>

<pallas_src>
import jax
import jax.numpy as jnp
from jax.experimental import pallas as pl
from jax.experimental.pallas import tpu as pltpu

INPUT_SIZE = 10
TREND_SIZE = 5
SEASON_SIZE = 3
HIDDEN = TREND_SIZE + SEASON_SIZE  # 8 — exactly one vreg's worth of sublanes


def _round_up(n, m):
    return ((n + m - 1) // m) * m


def ts_kernel(x_ref, w1_ref, b1_ref, w2_ref, b2_ref, o_ref):
    # x_ref : (INPUT_SIZE, TILE_B)  — features on sublanes, batch on lanes
    # w1_ref: (HIDDEN, INPUT_SIZE)  — fused first-layer weights (transposed)
    # b1_ref: (HIDDEN, 1), w2_ref: (HIDDEN, 1), b2_ref: (1, 1) in SMEM
    tile_b = x_ref.shape[1]

    w1 = w1_ref[...]
    b1 = b1_ref[...]
    w2 = w2_ref[...]

    # Layer 1 (fused trend|season), VPU only: hidden units on sublanes, batch on
    # lanes. Unrolled loop of INPUT_SIZE scalar-broadcast FMAs over (8, TILE_B).
    h = jnp.broadcast_to(b1, (HIDDEN, tile_b))
    for k in range(INPUT_SIZE):
        h = h + w1[:, k:k + 1] * x_ref[k:k + 1, :]
    h = jnp.maximum(h, 0.0)

    # Layer 2 (fused) + folded biases: lane-wise weighted 8-way sublane reduce.
    out = jnp.sum(w2 * h, axis=0, keepdims=True)        # (1, TILE_B)
    o_ref[...] = out + b2_ref[0, 0]


def time_series_model(x, params, tile_b=4096):
    """x: (B, INPUT_SIZE) float32. params: dict of weights in (in, out) layout."""
    B = x.shape[0]

    # ---- host-side fusion of the two branches -------------------------------
    w1 = jnp.concatenate([params["wt1"], params["ws1"]], axis=1).T            # (HIDDEN, INPUT_SIZE)
    b1 = jnp.concatenate([params["bt1"], params["bs1"]], axis=1).reshape(HIDDEN, 1)
    w2 = jnp.concatenate([params["wt2"], params["ws2"]], axis=0).reshape(HIDDEN, 1)
    b2 = (params["bt2"] + params["bs2"] + params["bias"]).reshape(1, 1)

    # ---- lane-dense batch tiling --------------------------------------------
    tile_b = _round_up(min(max(tile_b, 128), _round_up(B, 128)), 128)
    b_pad = _round_up(B, tile_b)
    x_t = jnp.pad(x.T, ((0, 0), (0, b_pad - B)))                              # (INPUT_SIZE, B_pad)
    grid = (b_pad // tile_b,)

    out = pl.pallas_call(
        ts_kernel,
        out_shape=jax.ShapeDtypeStruct((1, b_pad), jnp.float32),
        grid_spec=pltpu.PrefetchScalarGridSpec(
            num_scalar_prefetch=0,
            grid=grid,
            in_specs=[
                # x: one lane-dense batch tile per grid step (auto double-buffered)
                pl.BlockSpec((INPUT_SIZE, tile_b), lambda i: (0, i)),
                # fused weights/biases: constant index_map -> resident across the grid
                pl.BlockSpec((HIDDEN, INPUT_SIZE), lambda i: (0, 0)),
                pl.BlockSpec((HIDDEN, 1), lambda i: (0, 0)),
                pl.BlockSpec((HIDDEN, 1), lambda i: (0, 0)),
                # folded scalar bias lives in SMEM (no padded VMEM tile)
                pl.BlockSpec(memory_space=pltpu.MemorySpace.SMEM),
            ],
            out_specs=pl.BlockSpec((1, tile_b), lambda i: (0, i)),
        ),
        compiler_params=pltpu.CompilerParams(
            dimension_semantics=("parallel",),
        ),
    )(x_t, w1, b1, w2, b2)

    return out[0, :B].reshape(B, 1)


def init_params(key):
    """Deterministic parameter init. Weights stored transposed: (in_features, out_features)."""
    ks = jax.random.split(key, 9)
    p = {
        # trend_layer1: Linear(input_size, trend_size)
        "wt1": jax.random.normal(ks[0], (INPUT_SIZE, TREND_SIZE), jnp.float32) * 0.1,
        "bt1": jax.random.normal(ks[1], (1, TREND_SIZE), jnp.float32) * 0.1,
        # trend_layer2: Linear(trend_size, 1)
        "wt2": jax.random.normal(ks[2], (TREND_SIZE, 1), jnp.float32) * 0.1,
        "bt2": jax.random.normal(ks[3], (1, 1), jnp.float32) * 0.1,
        # season_layer1: Linear(input_size, season_size)
        "ws1": jax.random.normal(ks[4], (INPUT_SIZE, SEASON_SIZE), jnp.float32) * 0.1,
        "bs1": jax.random.normal(ks[5], (1, SEASON_SIZE), jnp.float32) * 0.1,
        # season_layer2: Linear(season_size, 1)
        "ws2": jax.random.normal(ks[6], (SEASON_SIZE, 1), jnp.float32) * 0.1,
        "bs2": jax.random.normal(ks[7], (1, 1), jnp.float32) * 0.1,
        # self.bias: nn.Parameter(torch.randn(1))
        "bias": jax.random.normal(ks[8], (1, 1), jnp.float32),
    }
    return p


def reference_forward(x, p):
    """Pure-JAX reference of the PyTorch forward for correctness check."""
    h_t = jnp.maximum(x @ p["wt1"] + p["bt1"], 0.0)
    trend = h_t @ p["wt2"] + p["bt2"]
    h_s = jnp.maximum(x @ p["ws1"] + p["bs1"], 0.0)
    season = h_s @ p["ws2"] + p["bs2"]
    return trend + season + p["bias"]


if __name__ == "__main__":
    key = jax.random.PRNGKey(0)
    kx, kp = jax.random.split(key)
    params = init_params(kp)

    # Small batch, matching the PyTorch example shape family (B, input_size).
    B = 2
    x = jax.random.normal(kx, (B, INPUT_SIZE), jnp.float32)
    out = jax.block_until_ready(time_series_model(x, params))
    ref = reference_forward(x, params)
    assert out.shape == (B, 1)
    assert jnp.allclose(out, ref, atol=1e-4, rtol=1e-4), (out, ref)

    # Larger batch that exercises the multi-tile lane-dense grid + padding path.
    B2 = 1000
    x2 = jax.random.normal(kx, (B2, INPUT_SIZE), jnp.float32)
    out2 = jax.block_until_ready(time_series_model(x2, params, tile_b=256))
    ref2 = reference_forward(x2, params)
    assert out2.shape == (B2, 1)
    assert jnp.allclose(out2, ref2, atol=1e-4, rtol=1e-4)

    print("KERNEL_OK")
</pallas_src>

<mosaic_0001>
module attributes {stable_mosaic.version = 11 : i64} {
  func.func @ts_kernel(%arg0: i32, %arg1: memref<10x128xf32, #tpu.memory_space<vmem>>, %arg2: memref<8x10xf32, #tpu.memory_space<vmem>>, %arg3: memref<8x1xf32, #tpu.memory_space<vmem>>, %arg4: memref<8x1xf32, #tpu.memory_space<vmem>>, %arg5: memref<1x1xf32, #tpu.memory_space<smem>>, %arg6: memref<1x128xf32, #tpu.memory_space<vmem>>) attributes {dimension_semantics = [#tpu.dimension_semantics<parallel>], iteration_bounds = array<i64: 1>, scalar_prefetch = 0 : i64, scratch_operands = 0 : i64, tpu.core_type = #tpu.core_type<tc>, window_params = [{transform_indices = @transform_0, window_bounds = array<i64: 10, 128>}, {pipeline_mode = #tpu.pipeline_mode<synchronous>, transform_indices = @transform_1, window_bounds = array<i64: 8, 10>}, {pipeline_mode = #tpu.pipeline_mode<synchronous>, transform_indices = @transform_2, window_bounds = array<i64: 8, 1>}, {pipeline_mode = #tpu.pipeline_mode<synchronous>, transform_indices = @transform_3, window_bounds = array<i64: 8, 1>}, {transform_indices = @transform_4, window_bounds = array<i64: 1, 1>}, {transform_indices = @transform_5, window_bounds = array<i64: 1, 128>}]} {
    %c0 = arith.constant 0 : index
    %c0_0 = arith.constant 0 : index
    %0 = vector.load %arg2[%c0, %c0_0] : memref<8x10xf32, #tpu.memory_space<vmem>>, vector<8x10xf32>
    %c0_1 = arith.constant 0 : index
    %c0_2 = arith.constant 0 : index
    %1 = vector.load %arg3[%c0_1, %c0_2] : memref<8x1xf32, #tpu.memory_space<vmem>>, vector<8x1xf32>
    %c0_3 = arith.constant 0 : index
    %c0_4 = arith.constant 0 : index
    %2 = vector.load %arg4[%c0_3, %c0_4] : memref<8x1xf32, #tpu.memory_space<vmem>>, vector<8x1xf32>
    %3 = vector.shape_cast %1 : vector<8x1xf32> to vector<8x1xf32>
    %4 = vector.broadcast %3 : vector<8x1xf32> to vector<8x128xf32>
    %5 = vector.extract_strided_slice %0 {offsets = [0, 0], sizes = [8, 1], strides = [1, 1]} : vector<8x10xf32> to vector<8x1xf32>
    %c0_5 = arith.constant 0 : index
    %c0_6 = arith.constant 0 : index
    %6 = vector.load %arg1[%c0_5, %c0_6] : memref<10x128xf32, #tpu.memory_space<vmem>>, vector<1x128xf32>
    %7 = vector.broadcast %5 : vector<8x1xf32> to vector<8x128xf32>
    %8 = vector.broadcast %6 : vector<1x128xf32> to vector<8x128xf32>
    %9 = arith.mulf %7, %8 : vector<8x128xf32>
    %10 = arith.addf %4, %9 : vector<8x128xf32>
    %11 = vector.extract_strided_slice %0 {offsets = [0, 1], sizes = [8, 1], strides = [1, 1]} : vector<8x10xf32> to vector<8x1xf32>
    %c1 = arith.constant 1 : index
    %c0_7 = arith.constant 0 : index
    %12 = vector.load %arg1[%c1, %c0_7] : memref<10x128xf32, #tpu.memory_space<vmem>>, vector<1x128xf32>
    %13 = vector.broadcast %11 : vector<8x1xf32> to vector<8x128xf32>
    %14 = vector.broadcast %12 : vector<1x128xf32> to vector<8x128xf32>
    %15 = arith.mulf %13, %14 : vector<8x128xf32>
    %16 = arith.addf %10, %15 : vector<8x128xf32>
    %17 = vector.extract_strided_slice %0 {offsets = [0, 2], sizes = [8, 1], strides = [1, 1]} : vector<8x10xf32> to vector<8x1xf32>
    %c2 = arith.constant 2 : index
    %c0_8 = arith.constant 0 : index
    %18 = vector.load %arg1[%c2, %c0_8] : memref<10x128xf32, #tpu.memory_space<vmem>>, vector<1x128xf32>
    %19 = vector.broadcast %17 : vector<8x1xf32> to vector<8x128xf32>
    %20 = vector.broadcast %18 : vector<1x128xf32> to vector<8x128xf32>
    %21 = arith.mulf %19, %20 : vector<8x128xf32>
    %22 = arith.addf %16, %21 : vector<8x128xf32>
    %23 = vector.extract_strided_slice %0 {offsets = [0, 3], sizes = [8, 1], strides = [1, 1]} : vector<8x10xf32> to vector<8x1xf32>
    %c3 = arith.constant 3 : index
    %c0_9 = arith.constant 0 : index
    %24 = vector.load %arg1[%c3, %c0_9] : memref<10x128xf32, #tpu.memory_space<vmem>>, vector<1x128xf32>
    %25 = vector.broadcast %23 : vector<8x1xf32> to vector<8x128xf32>
    %26 = vector.broadcast %24 : vector<1x128xf32> to vector<8x128xf32>
    %27 = arith.mulf %25, %26 : vector<8x128xf32>
    %28 = arith.addf %22, %27 : vector<8x128xf32>
    %29 = vector.extract_strided_slice %0 {offsets = [0, 4], sizes = [8, 1], strides = [1, 1]} : vector<8x10xf32> to vector<8x1xf32>
    %c4 = arith.constant 4 : index
    %c0_10 = arith.constant 0 : index
    %30 = vector.load %arg1[%c4, %c0_10] : memref<10x128xf32, #tpu.memory_space<vmem>>, vector<1x128xf32>
    %31 = vector.broadcast %29 : vector<8x1xf32> to vector<8x128xf32>
    %32 = vector.broadcast %30 : vector<1x128xf32> to vector<8x128xf32>
    %33 = arith.mulf %31, %32 : vector<8x128xf32>
    %34 = arith.addf %28, %33 : vector<8x128xf32>
    %35 = vector.extract_strided_slice %0 {offsets = [0, 5], sizes = [8, 1], strides = [1, 1]} : vector<8x10xf32> to vector<8x1xf32>
    %c5 = arith.constant 5 : index
    %c0_11 = arith.constant 0 : index
    %36 = vector.load %arg1[%c5, %c0_11] : memref<10x128xf32, #tpu.memory_space<vmem>>, vector<1x128xf32>
    %37 = vector.broadcast %35 : vector<8x1xf32> to vector<8x128xf32>
    %38 = vector.broadcast %36 : vector<1x128xf32> to vector<8x128xf32>
    %39 = arith.mulf %37, %38 : vector<8x128xf32>
    %40 = arith.addf %34, %39 : vector<8x128xf32>
    %41 = vector.extract_strided_slice %0 {offsets = [0, 6], sizes = [8, 1], strides = [1, 1]} : vector<8x10xf32> to vector<8x1xf32>
    %c6 = arith.constant 6 : index
    %c0_12 = arith.constant 0 : index
    %42 = vector.load %arg1[%c6, %c0_12] : memref<10x128xf32, #tpu.memory_space<vmem>>, vector<1x128xf32>
    %43 = vector.broadcast %41 : vector<8x1xf32> to vector<8x128xf32>
    %44 = vector.broadcast %42 : vector<1x128xf32> to vector<8x128xf32>
    %45 = arith.mulf %43, %44 : vector<8x128xf32>
    %46 = arith.addf %40, %45 : vector<8x128xf32>
    %47 = vector.extract_strided_slice %0 {offsets = [0, 7], sizes = [8, 1], strides = [1, 1]} : vector<8x10xf32> to vector<8x1xf32>
    %c7 = arith.constant 7 : index
    %c0_13 = arith.constant 0 : index
    %48 = vector.load %arg1[%c7, %c0_13] : memref<10x128xf32, #tpu.memory_space<vmem>>, vector<1x128xf32>
    %49 = vector.broadcast %47 : vector<8x1xf32> to vector<8x128xf32>
    %50 = vector.broadcast %48 : vector<1x128xf32> to vector<8x128xf32>
    %51 = arith.mulf %49, %50 : vector<8x128xf32>
    %52 = arith.addf %46, %51 : vector<8x128xf32>
    %53 = vector.extract_strided_slice %0 {offsets = [0, 8], sizes = [8, 1], strides = [1, 1]} : vector<8x10xf32> to vector<8x1xf32>
    %c8 = arith.constant 8 : index
    %c0_14 = arith.constant 0 : index
    %54 = vector.load %arg1[%c8, %c0_14] : memref<10x128xf32, #tpu.memory_space<vmem>>, vector<1x128xf32>
    %55 = vector.broadcast %53 : vector<8x1xf32> to vector<8x128xf32>
    %56 = vector.broadcast %54 : vector<1x128xf32> to vector<8x128xf32>
    %57 = arith.mulf %55, %56 : vector<8x128xf32>
    %58 = arith.addf %52, %57 : vector<8x128xf32>
    %59 = vector.extract_strided_slice %0 {offsets = [0, 9], sizes = [8, 1], strides = [1, 1]} : vector<8x10xf32> to vector<8x1xf32>
    %c9 = arith.constant 9 : index
    %c0_15 = arith.constant 0 : index
    %60 = vector.load %arg1[%c9, %c0_15] : memref<10x128xf32, #tpu.memory_space<vmem>>, vector<1x128xf32>
    %61 = vector.broadcast %59 : vector<8x1xf32> to vector<8x128xf32>
    %62 = vector.broadcast %60 : vector<1x128xf32> to vector<8x128xf32>
    %63 = arith.mulf %61, %62 : vector<8x128xf32>
    %64 = arith.addf %58, %63 : vector<8x128xf32>
    %cst = arith.constant 0.000000e+00 : f32
    %65 = vector.broadcast %cst : f32 to vector<8x128xf32>
    %66 = arith.maximumf %64, %65 : vector<8x128xf32>
    %67 = vector.broadcast %2 : vector<8x1xf32> to vector<8x128xf32>
    %68 = arith.mulf %67, %66 : vector<8x128xf32>
    %cst_16 = arith.constant dense<0.000000e+00> : vector<128xf32>
    %69 = vector.multi_reduction <add>, %68, %cst_16 [0] : vector<8x128xf32> to vector<128xf32>
    %70 = vector.shape_cast %69 : vector<128xf32> to vector<1x128xf32>
    %c0_17 = arith.constant 0 : index
    %c0_18 = arith.constant 0 : index
    %71 = memref.load %arg5[%c0_17, %c0_18] : memref<1x1xf32, #tpu.memory_space<smem>>
    %72 = vector.broadcast %71 : f32 to vector<1x128xf32>
    %73 = arith.addf %70, %72 : vector<1x128xf32>
    %c0_19 = arith.constant 0 : index
    %c0_20 = arith.constant 0 : index
    %74 = vector.load %arg6[%c0_19, %c0_20] : memref<1x128xf32, #tpu.memory_space<vmem>>, vector<1x128xf32>
    tpu.vector_store %arg6[%c0_19, %c0_20], %73 {strides = array<i32>} : memref<1x128xf32, #tpu.memory_space<vmem>>, vector<1x128xf32>,
    return
  }
  func.func @transform_0(%arg0: i32) -> (i32, i32) {
    %c0_i32 = arith.constant 0 : i32
    %c0_i32_0 = arith.constant 0 : i32
    return %c0_i32, %arg0 : i32, i32
  }
  func.func @transform_1(%arg0: i32) -> (i32, i32) {
    %c0_i32 = arith.constant 0 : i32
    %c0_i32_0 = arith.constant 0 : i32
    %c0_i32_1 = arith.constant 0 : i32
    return %c0_i32, %c0_i32_0 : i32, i32
  }
  func.func @transform_2(%arg0: i32) -> (i32, i32) {
    %c0_i32 = arith.constant 0 : i32
    %c0_i32_0 = arith.constant 0 : i32
    %c0_i32_1 = arith.constant 0 : i32
    return %c0_i32, %c0_i32_0 : i32, i32
  }
  func.func @transform_3(%arg0: i32) -> (i32, i32) {
    %c0_i32 = arith.constant 0 : i32
    %c0_i32_0 = arith.constant 0 : i32
    %c0_i32_1 = arith.constant 0 : i32
    return %c0_i32, %c0_i32_0 : i32, i32
  }
  func.func @transform_4(%arg0: i32) -> (i32, i32) {
    %c0_i32 = arith.constant 0 : i32
    %c0_i32_0 = arith.constant 0 : i32
    %c0_i32_1 = arith.constant 0 : i32
    return %c0_i32, %c0_i32_0 : i32, i32
  }
  func.func @transform_5(%arg0: i32) -> (i32, i32) {
    %c0_i32 = arith.constant 0 : i32
    %c0_i32_0 = arith.constant 0 : i32
    return %c0_i32, %arg0 : i32, i32
  }
}

</mosaic_0001>

<llo_original>
// kernel: tpu_custom_call.1
$region0: #{tpu_custom_call.1}
  #allocation0 [shape = 'u32[]', space=smem, size = 0x4, offset = 0x4, fixed_abs, tag = 'smem constant byte address 0x4 - core index']
  #allocation1 [shape = 'u32[72,128]{1,0:T(1,128)}', space=vmem, size = 0x9000, scoped, tag = 'internal scratch']
  #allocation2 [shape = 'f32[1,1]{1,0:T(1,128)S(6)}', space=smem, size = 0x200, scoped, tag = 'scoped memory for tpu_custom_call.1']
  %s0 = inlined_call_operand.vmem [shape: f32[10,128], index: 0, kind: input, shape index: {}]
  %s1 = inlined_call_operand.hbm [shape: f32[8,10], index: 1, kind: input, shape index: {}]
  %s2 = inlined_call_operand.vmem [shape: f32[8,1], index: 2, kind: input, shape index: {}]
  %s3 = inlined_call_operand.vmem [shape: f32[8,1], index: 3, kind: input, shape index: {}]
  %s4 = inlined_call_operand.<no memory space> [shape: f32[1,1], index: 4, kind: input, shape index: {}]
  %s5 = inlined_call_operand.hbm [shape: f32[1,128], index: 5, kind: output, shape index: {}]
  %s6 = sld [smem:[#allocation0]]
  $region34: #{tpu_custom_call.1} parent=0
    _
  %s8 = ssub.s32 1, %s6
  %s9 = scalar_select 0, %s8, %s6
  %10 = sst [smem:[#allocation2]] %s4
  $region1: #{tpu_custom_call.1} parent=0
    #allocation3 [shape = 'u8[4096]{0}', space=vmem, size = 0x1000, scoped, tag = 'input window, operand 1, single buffered']
    #allocation4 [shape = 's32[1]{0}', space=sflag, size = 0x4, scoped, tag = 'scoped memory for tpu_custom_call.1']
    #allocation5 [shape = 's32[1]{0}', space=sflag, size = 0x4, scoped, tag = 'scoped memory for tpu_custom_call.1']
    #allocation6 [shape = 'u8[512]{0}', space=vmem, size = 0x400, scoped, tag = 'output window, operand 0, single buffered']
    %11 = vsyncpa [#allocation4], 0
    %12 = vsyncpa [#allocation5], 0
    // Predicated region
    $region2: #{tpu_custom_call.1} parent=1 // pred_check
      _
    $region3: #{tpu_custom_call.1} parent=1 // pred_check_branch
      %14 = sbr.rel (0) target = $region5
    $region4: #{tpu_custom_call.1} parent=1 // pred_region
      _
    $region5: #{tpu_custom_call.1} parent=1 // pred_fallthru
      _
    // Predicated region
    $region6: #{tpu_custom_call.1} parent=1 // pred_check
      _
    $region7: #{tpu_custom_call.1} parent=1 // pred_check_branch
      %16 = sbr.rel (0) target = $region9
    $region8: #{tpu_custom_call.1} parent=1 // pred_region
      %18 = vsyncadd [#allocation4], 0
      %s20 = sshll.u32 %s1, 4
      %s21 = int_to_ptr.hbm [resolvable:$true] %s20
      %s22 = sshll.u32 [#allocation3], 4
      %s23 = int_to_ptr.vmem [resolvable:$true] %s22
      %25 = dma.hbm_to_vmem [thread:$0]  %s21, 128, %s23, [#allocation4]
    $region9: #{tpu_custom_call.1} parent=1 // pred_fallthru
      _
    // Predicated region
    $region10: #{tpu_custom_call.1} parent=1 // pred_check
      _
    $region11: #{tpu_custom_call.1} parent=1 // pred_check_branch
      %27 = sbr.rel (0) target = $region13
    $region12: #{tpu_custom_call.1} parent=1 // pred_region
      _
    $region13: #{tpu_custom_call.1} parent=1 // pred_fallthru
      _
    // Predicated region
    $region14: #{tpu_custom_call.1} parent=1 // pred_check
      _
    $region15: #{tpu_custom_call.1} parent=1 // pred_check_branch
      %29 = sbr.rel (0) target = $region17
    $region16: #{tpu_custom_call.1} parent=1 // pred_region
      _
    $region17: #{tpu_custom_call.1} parent=1 // pred_fallthru
      _
    // Predicated region
    $region18: #{tpu_custom_call.1} parent=1 // pred_check
      _
    $region19: #{tpu_custom_call.1} parent=1 // pred_check_branch
      %31 = sbr.rel (0) target = $region21
    $region20: #{tpu_custom_call.1} parent=1 // pred_region
      _
    $region21: #{tpu_custom_call.1} parent=1 // pred_fallthru
      _
    // Predicated region
    $region22: #{tpu_custom_call.1} parent=1 // pred_check
      _
    $region23: #{tpu_custom_call.1} parent=1 // pred_check_branch
      %33 = sbr.rel (0) target = $region25
    $region24: #{tpu_custom_call.1} parent=1 // pred_region
      %35 = dma.done [#allocation4], 128
    $region25: #{tpu_custom_call.1} parent=1 // pred_fallthru
      _
    %v36 = vld [vmem:[#allocation3] sm:$0xff]
    %v37 = vld [vmem:[%s2] sm:$0xff]
    %v38 = vld [vmem:[%s3] sm:$0xff]
    %40 = vset.pattern.permute.xlu0 0
    %41 = vperm.xlu0 %40, %v37
    %v42 = vpop.permute.xlu0 %41
    %v44 = vld [vmem:[%s0] sm:$0x1]
    %46 = vset.pattern.permute.xlu0 0
    %47 = vperm.xlu0 %46, %v36
    %v48 = vpop.permute.xlu0 %47
    %v50 = vperm.slane %v44, 0
    %v51 = vmul.f32 %v48, %v50
    %v52 = vadd.f32 %v42, %v51
    %v53 = vld [vmem:[%s0 + $0x1] sm:$0x1]
    %54 = vset.pattern.permute.xlu0 1
    %55 = vperm.xlu0 %54, %v36
    %v56 = vpop.permute.xlu0 %55
    %v58 = vperm.slane %v53, 0
    %v59 = vmul.f32 %v56, %v58
    %v60 = vadd.f32 %v52, %v59
    %v61 = vld [vmem:[%s0 + $0x2] sm:$0x1]
    %62 = vset.pattern.permute.xlu0 2
    %63 = vperm.xlu0 %62, %v36
    %v64 = vpop.permute.xlu0 %63
    %v66 = vperm.slane %v61, 0
    %v67 = vmul.f32 %v64, %v66
    %v68 = vadd.f32 %v60, %v67
    %v69 = vld [vmem:[%s0 + $0x3] sm:$0x1]
    %70 = vset.pattern.permute.xlu0 3
    %71 = vperm.xlu0 %70, %v36
    %v72 = vpop.permute.xlu0 %71
    %v74 = vperm.slane %v69, 0
    %v75 = vmul.f32 %v72, %v74
    %v76 = vadd.f32 %v68, %v75
    %v77 = vld [vmem:[%s0 + $0x4] sm:$0x1]
    %78 = vset.pattern.permute.xlu0 4
    %79 = vperm.xlu0 %78, %v36
    %v80 = vpop.permute.xlu0 %79
    %v82 = vperm.slane %v77, 0
    %v83 = vmul.f32 %v80, %v82
    %v84 = vadd.f32 %v76, %v83
    %v85 = vld [vmem:[%s0 + $0x5] sm:$0x1]
    %86 = vset.pattern.permute.xlu0 5
    %87 = vperm.xlu0 %86, %v36
    %v88 = vpop.permute.xlu0 %87
    %v90 = vperm.slane %v85, 0
    %v91 = vmul.f32 %v88, %v90
    %v92 = vadd.f32 %v84, %v91
    %v93 = vld [vmem:[%s0 + $0x6] sm:$0x1]
    %94 = vset.pattern.permute.xlu0 6
    %95 = vperm.xlu0 %94, %v36
    %v96 = vpop.permute.xlu0 %95
    %v98 = vperm.slane %v93, 0
    %v99 = vmul.f32 %v96, %v98
    %v100 = vadd.f32 %v92, %v99
    %v101 = vld [vmem:[%s0 + $0x7] sm:$0x1]
    %102 = vset.pattern.permute.xlu0 7
    %103 = vperm.xlu0 %102, %v36
    %v104 = vpop.permute.xlu0 %103
    %v106 = vperm.slane %v101, 0
    %v107 = vmul.f32 %v104, %v106
    %v108 = vadd.f32 %v100, %v107
    %v109 = vld [vmem:[%s0 + $0x8] sm:$0x1]
    %110 = vset.pattern.permute.xlu0 8
    %111 = vperm.xlu0 %110, %v36
    %v112 = vpop.permute.xlu0 %111
    %v114 = vperm.slane %v109, 0
    %v115 = vmul.f32 %v112, %v114
    %v116 = vadd.f32 %v108, %v115
    %v117 = vld [vmem:[%s0 + $0x9] sm:$0x1]
    %118 = vset.pattern.permute.xlu0 9
    %119 = vperm.xlu0 %118, %v36
    %v120 = vpop.permute.xlu0 %119
    %v122 = vperm.slane %v117, 0
    %v123 = vmul.f32 %v120, %v122
    %v124 = vadd.f32 %v116, %v123
    %v125 = vmax.f32 %v124, 0.0
    %127 = vset.pattern.permute.xlu0 0
    %128 = vperm.xlu0 %127, %v38
    %v129 = vpop.permute.xlu0 %128
    %v131 = vmul.f32 %v129, %v125
    %v132 = vrot.slane %v131, 4
    %v133 = vadd.f32 %v131, %v132
    %v134 = vrot.slane %v133, 2
    %v135 = vadd.f32 %v133, %v134
    %v136 = vrot.slane %v135, 1
    %v137 = vadd.f32 %v135, %v136
    %s138 = sld [smem:[#allocation2]]
    %v139 = vstv %s138
    %v140 = vadd.f32 %v137, %v139
    %141 = vst [vmem:[#allocation6] sm:$0x1] %v140
    // Predicated region
    $region26: #{tpu_custom_call.1} parent=1 // pred_check
      _
    $region27: #{tpu_custom_call.1} parent=1 // pred_check_branch
      %143 = sbr.rel (0) target = $region29
    $region28: #{tpu_custom_call.1} parent=1 // pred_region
      %145 = vsyncadd [#allocation5], 0
      %s147 = sshll.u32 [#allocation6], 4
      %s148 = int_to_ptr.vmem [resolvable:$true] %s147
      %s149 = sshll.u32 %s5, 4
      %s150 = int_to_ptr.hbm [resolvable:$true] %s149
      %152 = dma.vmem_to_hbm [thread:$0]  %s148, 16, %s150, [#allocation5]
    $region29: #{tpu_custom_call.1} parent=1 // pred_fallthru
      _
    // Predicated region
    $region30: #{tpu_custom_call.1} parent=1 // pred_check
      _
    $region31: #{tpu_custom_call.1} parent=1 // pred_check_branch
      %154 = sbr.rel (0) target = $region33
    $region32: #{tpu_custom_call.1} parent=1 // pred_region
      %156 = dma.done [#allocation5], 16
    $region33: #{tpu_custom_call.1} parent=1 // pred_fallthru
      _
    %157 = vsyncpa [#allocation4], 1
    %158 = vsyncpa [#allocation5], 1

</llo_original>
